<compile_context>
chip_gen: v6e
topology: v6e:2x2x1
jax: 0.10.0
libtpu: 0.0.40
codegen_flags: <defaults>
</compile_context>

<pallas_src>
import math
import jax
import jax.numpy as jnp
from jax.experimental import pallas as pl
from jax.experimental.pallas import tpu as pltpu


# ----------------------------------------------------------------------------
# FixedNormal (JAX re-implementation of torch.distributions.Normal wrapper)
# ----------------------------------------------------------------------------
class FixedNormal:
    def __init__(self, loc, scale):
        self.mean = loc
        self.scale = scale

    def log_probs(self, actions):
        var = self.scale ** 2
        log_prob = (
            -((actions - self.mean) ** 2) / (2.0 * var)
            - jnp.log(self.scale)
            - 0.5 * math.log(2.0 * math.pi)
        )
        return log_prob.sum(-1, keepdims=True)

    def entropy(self):
        ent = 0.5 + 0.5 * math.log(2.0 * math.pi) + jnp.log(self.scale)
        return ent.sum(-1)

    def mode(self):
        return self.mean


# ----------------------------------------------------------------------------
# Fused Pallas kernel: both layers of all 5 heads in one body (two MXU passes)
# ----------------------------------------------------------------------------
def _fused_kernel(x_ref, w1_ref, b1_ref, w2_ref, b2_ref, mean_ref):
    # x_ref   : (TB, D)      bf16 input tile
    # w1_ref  : (D, 5*D)     bf16 fused first-layer weights (x @ W1^T layout)
    # b1_ref  : (1, 5*D)     f32 fused first-layer biases
    # w2_ref  : (5*D, 5)     f32 block-diagonal second-layer weights
    # b2_ref  : (1, 5)       f32 second-layer biases
    # mean_ref: (TB, 5)      f32 action means (lane-contiguous)
    x = x_ref[...]                                                   # (TB, D)

    # First layer: single wide MXU pass over all 5 heads, f32 accumulation.
    h = jnp.tanh(
        jnp.dot(x, w1_ref[...], preferred_element_type=jnp.float32)
        + b1_ref[...]
    )                                                                # (TB, 5D)

    # Second layer: block-diagonal MXU matmul -> lane-dense (TB, 5) output.
    mean = (
        jnp.dot(h, w2_ref[...], preferred_element_type=jnp.float32)
        + b2_ref[...]
    )
    mean_ref[...] = mean.astype(mean_ref.dtype)


def diag_gaussian5_forward(x, params):
    """Forward pass of DiagGaussian5. x: (B, num_inputs) float32."""
    w1_all, b1_all, w2_bd, b2_all, logstd_bias = params
    B, D = x.shape
    H = b2_all.shape[-1]
    HD = w1_all.shape[-1]

    # Batch tile: multiple of 8, capped so VMEM stays tiny even at big B.
    TB = min(1024, max(8, ((B + 7) // 8) * 8))
    B_pad = pl.cdiv(B, TB) * TB
    x_in = x.astype(jnp.bfloat16)
    if B_pad != B:
        x_in = jnp.pad(x_in, ((0, B_pad - B), (0, 0)))

    action_mean = pl.pallas_call(
        _fused_kernel,
        out_shape=jax.ShapeDtypeStruct((B_pad, H), jnp.float32),
        grid=(B_pad // TB,),
        in_specs=[
            pl.BlockSpec((TB, D), lambda i: (i, 0)),      # x: tiled over batch
            pl.BlockSpec((D, HD), lambda i: (0, 0)),      # w1: resident
            pl.BlockSpec((1, HD), lambda i: (0, 0)),      # b1: resident
            pl.BlockSpec((HD, H), lambda i: (0, 0)),      # w2 (block-diag)
            pl.BlockSpec((1, H), lambda i: (0, 0)),       # b2
        ],
        out_specs=pl.BlockSpec((TB, H), lambda i: (i, 0)),
        compiler_params=pltpu.CompilerParams(
            dimension_semantics=("parallel",),
        ),
    )(x_in, w1_all, b1_all, w2_bd, b2_all)

    if B_pad != B:
        action_mean = action_mean[:B]

    # std is batch-independent: exp of the AddBias parameter, broadcast.
    action_std = jnp.broadcast_to(jnp.exp(logstd_bias), action_mean.shape)

    dist = FixedNormal(action_mean, action_std)
    return dist, action_mean


# ----------------------------------------------------------------------------
# Deterministic parameter initialization (orthogonal weights, zero biases),
# pre-fused into the kernel layout (done once, outside the hot path).
# ----------------------------------------------------------------------------
def _orthogonal(key, rows, cols):
    a = jax.random.normal(key, (max(rows, cols), min(rows, cols)), jnp.float32)
    q, r = jnp.linalg.qr(a)
    d = jnp.sign(jnp.diagonal(r))
    d = jnp.where(d == 0, 1.0, d)
    q = q * d[None, :]
    q = q[:rows, :cols] if rows >= cols else q.T[:rows, :cols]
    return q


def init_params(key, num_inputs, num_outputs):
    assert num_outputs == 5, "DiagGaussian5 has 5 fixed heads"
    D = num_inputs
    keys = jax.random.split(key, 2 * num_outputs)
    w1_cols = []
    w2_bd = jnp.zeros((num_outputs * D, num_outputs), jnp.float32)
    for h in range(num_outputs):
        # nn.Linear(D, D): torch weight (out=D, in=D); stored transposed so the
        # kernel computes x @ W1^T directly.
        W1 = _orthogonal(keys[2 * h], D, D)               # (D, D)
        w1_cols.append(W1.T)                              # (in, out)
        # nn.Linear(D, 1): torch weight (1, D) -> column h of the block-diag.
        W2 = _orthogonal(keys[2 * h + 1], 1, D)           # (1, D)
        w2_bd = w2_bd.at[h * D:(h + 1) * D, h].set(W2[0])
    w1_all = jnp.concatenate(w1_cols, axis=1).astype(jnp.bfloat16)  # (D, 5D)
    b1_all = jnp.zeros((1, num_outputs * D), jnp.float32)           # (1, 5D)
    b2_all = jnp.zeros((1, num_outputs), jnp.float32)               # (1, 5)
    logstd_bias = jnp.zeros((1, num_outputs), jnp.float32)          # AddBias
    return (w1_all, b1_all, w2_bd, b2_all, logstd_bias)


if __name__ == "__main__":
    num_inputs = 32
    num_outputs = 5
    batch = 8

    key = jax.random.PRNGKey(0)
    k_param, k_x = jax.random.split(key)
    params = init_params(k_param, num_inputs, num_outputs)
    x = jax.random.normal(k_x, (batch, num_inputs), jnp.float32)

    dist, action_mean = diag_gaussian5_forward(x, params)
    jax.block_until_ready(action_mean)
    jax.block_until_ready(dist.scale)

    # sanity: exercise the distribution API once
    lp = dist.log_probs(action_mean)
    ent = dist.entropy()
    jax.block_until_ready(lp)
    jax.block_until_ready(ent)

    assert action_mean.shape == (batch, num_outputs)
    assert dist.scale.shape == (batch, num_outputs)
    assert lp.shape == (batch, 1)
    assert ent.shape == (batch,)
    assert bool(jnp.all(jnp.isfinite(action_mean)))
    print("KERNEL_OK")
</pallas_src>

<mosaic_0001>
module attributes {stable_mosaic.version = 11 : i64} {
  func.func @_fused_kernel(%arg0: i32, %arg1: memref<8x32xbf16, #tpu.memory_space<vmem>>, %arg2: memref<32x160xbf16, #tpu.memory_space<vmem>>, %arg3: memref<1x160xf32, #tpu.memory_space<vmem>>, %arg4: memref<160x5xf32, #tpu.memory_space<vmem>>, %arg5: memref<1x5xf32, #tpu.memory_space<vmem>>, %arg6: memref<8x5xf32, #tpu.memory_space<vmem>>) attributes {dimension_semantics = [#tpu.dimension_semantics<parallel>], iteration_bounds = array<i64: 1>, scalar_prefetch = 0 : i64, scratch_operands = 0 : i64, tpu.core_type = #tpu.core_type<tc>, window_params = [{transform_indices = @transform_0, window_bounds = array<i64: 8, 32>}, {pipeline_mode = #tpu.pipeline_mode<synchronous>, transform_indices = @transform_1, window_bounds = array<i64: 32, 160>}, {pipeline_mode = #tpu.pipeline_mode<synchronous>, transform_indices = @transform_2, window_bounds = array<i64: 1, 160>}, {pipeline_mode = #tpu.pipeline_mode<synchronous>, transform_indices = @transform_3, window_bounds = array<i64: 160, 5>}, {pipeline_mode = #tpu.pipeline_mode<synchronous>, transform_indices = @transform_4, window_bounds = array<i64: 1, 5>}, {transform_indices = @transform_5, window_bounds = array<i64: 8, 5>}]} {
    %c0 = arith.constant 0 : index
    %c0_0 = arith.constant 0 : index
    %0 = vector.load %arg1[%c0, %c0_0] : memref<8x32xbf16, #tpu.memory_space<vmem>>, vector<8x32xbf16>
    %c0_1 = arith.constant 0 : index
    %c0_2 = arith.constant 0 : index
    %1 = vector.load %arg2[%c0_1, %c0_2] : memref<32x160xbf16, #tpu.memory_space<vmem>>, vector<32x160xbf16>
    %cst = arith.constant dense<0.000000e+00> : vector<8x160xf32>
    %2 = tpu.matmul %0, %1, %cst {dimension_numbers = #tpu.dot_dimension_numbers<[1], [0], [0], [1], [0, 0, 1, 1], [], []>} : vector<8x32xbf16>, vector<32x160xbf16>, vector<8x160xf32> -> vector<8x160xf32>
    %c0_3 = arith.constant 0 : index
    %c0_4 = arith.constant 0 : index
    %3 = vector.load %arg3[%c0_3, %c0_4] : memref<1x160xf32, #tpu.memory_space<vmem>>, vector<1x160xf32>
    %4 = vector.broadcast %3 : vector<1x160xf32> to vector<8x160xf32>
    %5 = arith.addf %2, %4 : vector<8x160xf32>
    %6 = math.tanh %5 : vector<8x160xf32>
    %c0_5 = arith.constant 0 : index
    %c0_6 = arith.constant 0 : index
    %7 = vector.load %arg4[%c0_5, %c0_6] : memref<160x5xf32, #tpu.memory_space<vmem>>, vector<160x5xf32>
    %cst_7 = arith.constant dense<0.000000e+00> : vector<8x5xf32>
    %8 = tpu.matmul %6, %7, %cst_7 {dimension_numbers = #tpu.dot_dimension_numbers<[1], [0], [0], [1], [0, 0, 1, 1], [], []>} : vector<8x160xf32>, vector<160x5xf32>, vector<8x5xf32> -> vector<8x5xf32>
    %c0_8 = arith.constant 0 : index
    %c0_9 = arith.constant 0 : index
    %9 = vector.load %arg5[%c0_8, %c0_9] : memref<1x5xf32, #tpu.memory_space<vmem>>, vector<1x5xf32>
    %10 = vector.broadcast %9 : vector<1x5xf32> to vector<8x5xf32>
    %11 = arith.addf %8, %10 : vector<8x5xf32>
    %c0_10 = arith.constant 0 : index
    %c0_11 = arith.constant 0 : index
    %12 = vector.load %arg6[%c0_10, %c0_11] : memref<8x5xf32, #tpu.memory_space<vmem>>, vector<8x5xf32>
    tpu.vector_store %arg6[%c0_10, %c0_11], %11 {strides = array<i32>} : memref<8x5xf32, #tpu.memory_space<vmem>>, vector<8x5xf32>,
    return
  }
  func.func @transform_0(%arg0: i32) -> (i32, i32) {
    %c0_i32 = arith.constant 0 : i32
    %c0_i32_0 = arith.constant 0 : i32
    return %arg0, %c0_i32 : i32, i32
  }
  func.func @transform_1(%arg0: i32) -> (i32, i32) {
    %c0_i32 = arith.constant 0 : i32
    %c0_i32_0 = arith.constant 0 : i32
    %c0_i32_1 = arith.constant 0 : i32
    return %c0_i32, %c0_i32_0 : i32, i32
  }
  func.func @transform_2(%arg0: i32) -> (i32, i32) {
    %c0_i32 = arith.constant 0 : i32
    %c0_i32_0 = arith.constant 0 : i32
    %c0_i32_1 = arith.constant 0 : i32
    return %c0_i32, %c0_i32_0 : i32, i32
  }
  func.func @transform_3(%arg0: i32) -> (i32, i32) {
    %c0_i32 = arith.constant 0 : i32
    %c0_i32_0 = arith.constant 0 : i32
    %c0_i32_1 = arith.constant 0 : i32
    return %c0_i32, %c0_i32_0 : i32, i32
  }
  func.func @transform_4(%arg0: i32) -> (i32, i32) {
    %c0_i32 = arith.constant 0 : i32
    %c0_i32_0 = arith.constant 0 : i32
    %c0_i32_1 = arith.constant 0 : i32
    return %c0_i32, %c0_i32_0 : i32, i32
  }
  func.func @transform_5(%arg0: i32) -> (i32, i32) {
    %c0_i32 = arith.constant 0 : i32
    %c0_i32_0 = arith.constant 0 : i32
    return %arg0, %c0_i32 : i32, i32
  }
}

</mosaic_0001>

<llo_original>
// kernel: tpu_custom_call.1
$region0: #{tpu_custom_call.1}
  #allocation0 [shape = 'u32[]', space=smem, size = 0x4, offset = 0x4, fixed_abs, tag = 'smem constant byte address 0x4 - core index']
  #allocation1 [shape = 'u32[144,128]{1,0:T(1,128)}', space=vmem, size = 0x12000, scoped, tag = 'internal scratch']
  %s0 = inlined_call_operand.vmem [shape: bf16[8,32], index: 0, kind: input, shape index: {}]
  %s1 = inlined_call_operand.vmem [shape: bf16[32,160], index: 1, kind: input, shape index: {}]
  %s2 = inlined_call_operand.vmem [shape: f32[1,160], index: 2, kind: input, shape index: {}]
  %s3 = inlined_call_operand.vmem [shape: f32[160,5], index: 3, kind: input, shape index: {}]
  %s4 = inlined_call_operand.vmem [shape: f32[1,5], index: 4, kind: input, shape index: {}]
  %s5 = inlined_call_operand.hbm [shape: f32[8,5], index: 5, kind: output, shape index: {}]
  %s6 = sld [smem:[#allocation0]]
  $region30: #{tpu_custom_call.1} parent=0
    _
  %s8 = ssub.s32 1, %s6
  %s9 = scalar_select 0, %s8, %s6
  $region1: #{tpu_custom_call.1} parent=0
    #allocation2 [shape = 'u8[4096]{0}', space=vmem, size = 0x1000, scoped, tag = 'output window, operand 0, single buffered']
    #allocation3 [shape = 's32[1]{0}', space=sflag, size = 0x4, scoped, tag = 'scoped memory for tpu_custom_call.1']
    %10 = vsyncpa [#allocation3], 0
    // Predicated region
    $region2: #{tpu_custom_call.1} parent=1 // pred_check
      _
    $region3: #{tpu_custom_call.1} parent=1 // pred_check_branch
      %12 = sbr.rel (0) target = $region5
    $region4: #{tpu_custom_call.1} parent=1 // pred_region
      _
    $region5: #{tpu_custom_call.1} parent=1 // pred_fallthru
      _
    // Predicated region
    $region6: #{tpu_custom_call.1} parent=1 // pred_check
      _
    $region7: #{tpu_custom_call.1} parent=1 // pred_check_branch
      %14 = sbr.rel (0) target = $region9
    $region8: #{tpu_custom_call.1} parent=1 // pred_region
      _
    $region9: #{tpu_custom_call.1} parent=1 // pred_fallthru
      _
    // Predicated region
    $region10: #{tpu_custom_call.1} parent=1 // pred_check
      _
    $region11: #{tpu_custom_call.1} parent=1 // pred_check_branch
      %16 = sbr.rel (0) target = $region13
    $region12: #{tpu_custom_call.1} parent=1 // pred_region
      _
    $region13: #{tpu_custom_call.1} parent=1 // pred_fallthru
      _
    // Predicated region
    $region14: #{tpu_custom_call.1} parent=1 // pred_check
      _
    $region15: #{tpu_custom_call.1} parent=1 // pred_check_branch
      %18 = sbr.rel (0) target = $region17
    $region16: #{tpu_custom_call.1} parent=1 // pred_region
      _
    $region17: #{tpu_custom_call.1} parent=1 // pred_fallthru
      _
    // Predicated region
    $region18: #{tpu_custom_call.1} parent=1 // pred_check
      _
    $region19: #{tpu_custom_call.1} parent=1 // pred_check_branch
      %20 = sbr.rel (0) target = $region21
    $region20: #{tpu_custom_call.1} parent=1 // pred_region
      _
    $region21: #{tpu_custom_call.1} parent=1 // pred_fallthru
      _
    %v22 = vld [vmem:[%s0] sm:$0xf]
    %v23 = vld [vmem:[%s1] sm:$0xff]
    %v24 = vld [vmem:[%s1 + $0x8] sm:$0xff]
    %v25 = vld [vmem:[%s1 + $0x10] sm:$0xff]
    %v26 = vld [vmem:[%s1 + $0x18] sm:$0xff]
    %v27 = vld [vmem:[%s2] sm:$0x3]
    %v29 = vlaneseq
    %v30 = vshrl.u32 %v29, 7
    %v31 = vsub.s32 0, %v30
    %v32 = vrot.slane %v27, %v31
    %v33 = vlaneseq
    %v34 = vshrl.u32 %v33, 7
    %v35 = vsub.s32 1, %v34
    %v36 = vrot.slane %v27, %v35
    %v43 = vunpack.c.l.b16 %v23
    %v44 = vunpack.c.h.b16 %v23
    %v45 = vunpack.c.l.b16 %v24
    %v46 = vunpack.c.h.b16 %v24
    %v47 = vunpack.c.l.b16 %v25
    %v48 = vunpack.c.h.b16 %v25
    %v49 = vunpack.c.l.b16 %v26
    %v50 = vunpack.c.h.b16 %v26
    %v51 = vpack.c.b16 %v45, %v43
    %v52 = vpack.c.b16 %v46, %v44
    %v53 = vpack.c.b16 %v49, %v47
    %v54 = vpack.c.b16 %v50, %v48
    %vm59 = vcmask 261120
    %v61 = vsel %vm59, %v22, 0
    %63 = vmatprep.subr.bf16.mxu0 0
    %64 = vmatpush1.bf16.msra.mxu0 0
    %65 = vmatprep.subr.bf16.mxu0 0
    %66 = vmatpush1.bf16.msra.mxu0 0
    %67 = vmatprep.subr.bf16.mxu0 0
    %68 = vmatpush1.bf16.msra.mxu0 0
    %69 = vmatprep.subr.bf16.mxu0 0
    %70 = vmatpush1.bf16.msra.mxu0 0
    %71 = vmatprep.subr.bf16.mxu0 0
    %72 = vmatpush1.bf16.msra.mxu0 0
    %73 = vmatprep.subr.bf16.mxu0 0
    %74 = vmatpush1.bf16.msra.mxu0 0
    %75 = vmatprep.subr.bf16.mxu0 %v54
    %76 = vmatpush1.bf16.msra.mxu0 %v53
    %77 = vmatprep.subr.bf16.mxu0 %v52
    %78 = vmatpush1.bf16.msra.mxu0 %v51
    %79 = vmatprep.subr.bf16.mxu0 0
    %80 = vmatpush2.bf16.msra.mxu0 0
    %81 = vmatprep.subr.bf16.mxu0 0
    %82 = vmatpush2.bf16.msra.mxu0 0
    %83 = vmatprep.subr.bf16.mxu0 0
    %84 = vmatpush2.bf16.msra.mxu0 0
    %85 = vmatprep.subr.bf16.mxu0 0
    %86 = vmatpush2.bf16.msra.mxu0 0
    %87 = vmatprep.subr.bf16.mxu0 0
    %88 = vmatpush2.bf16.msra.mxu0 0
    %89 = vmatprep.subr.bf16.mxu0 0
    %90 = vmatpush2.bf16.msra.mxu0 0
    %91 = vmatprep.subr.bf16.mxu0 0
    %92 = vmatpush2.bf16.msra.mxu0 0
    %93 = vmatprep.subr.bf16.mxu0 0
    %94 = vmatpush2.bf16.msra.mxu0 0
    %95 = vmatprep.mubr.bf16.mxu0 0
    %96 = vmatmul.mubr.bf16.gmra.mxu0 %v61
    %v97 = vpop.f32.mrf.mxu0
    %v98 = vadd.f32 %v32, %v97
    %v99 = vpop.f32.mrf.mxu0
    %v100 = vadd.f32 %v36, %v99
    %v101 = vpop.f32.mrf.mxu0
    %v102 = vpop.f32.mrf.mxu0
    %103 = vdwg.mxu0
    %v104 = vtanh.pop %v98
    %v105 = vtanh.pop %v100
    %v106 = vld [vmem:[%s3] sm:$0xff]
    %v107 = vld [vmem:[%s3 + $0x8] sm:$0xff]
    %v108 = vld [vmem:[%s3 + $0x10] sm:$0xff]
    %v109 = vld [vmem:[%s3 + $0x18] sm:$0xff]
    %v110 = vld [vmem:[%s3 + $0x20] sm:$0xff]
    %v111 = vld [vmem:[%s3 + $0x28] sm:$0xff]
    %v112 = vld [vmem:[%s3 + $0x30] sm:$0xff]
    %v113 = vld [vmem:[%s3 + $0x38] sm:$0xff]
    %v114 = vld [vmem:[%s3 + $0x40] sm:$0xff]
    %v115 = vld [vmem:[%s3 + $0x48] sm:$0xff]
    %v116 = vld [vmem:[%s3 + $0x50] sm:$0xff]
    %v117 = vld [vmem:[%s3 + $0x58] sm:$0xff]
    %v118 = vld [vmem:[%s3 + $0x60] sm:$0xff]
    %v119 = vld [vmem:[%s3 + $0x68] sm:$0xff]
    %v120 = vld [vmem:[%s3 + $0x70] sm:$0xff]
    %v121 = vld [vmem:[%s3 + $0x78] sm:$0xff]
    %v122 = vld [vmem:[%s3 + $0x80] sm:$0xff]
    %v123 = vld [vmem:[%s3 + $0x88] sm:$0xff]
    %v124 = vld [vmem:[%s3 + $0x90] sm:$0xff]
    %v125 = vld [vmem:[%s3 + $0x98] sm:$0xff]
    %v126 = vld [vmem:[%s4] sm:$0x1]
    %v128 = vlaneseq
    %v129 = vshrl.u32 %v128, 7
    %v130 = vsub.s32 0, %v129
    %v131 = vrot.slane %v126, %v130
    %v134 = vsel %vm59, %v105, 0
    %136 = vmatprep.subr.mxu0 0.0
    %137 = vmatpush1.msra.mxu0 %v121
    %138 = vmatprep.subr.mxu0 0.0
    %139 = vmatpush1.msra.mxu0 %v120
    %140 = vmatprep.subr.mxu0 0.0
    %141 = vmatpush1.msra.mxu0 %v119
    %142 = vmatprep.subr.mxu0 0.0
    %143 = vmatpush1.msra.mxu0 %v118
    %144 = vmatprep.subr.mxu0 0.0
    %145 = vmatpush1.msra.mxu0 %v117
    %146 = vmatprep.subr.mxu0 0.0
    %147 = vmatpush1.msra.mxu0 %v116
    %148 = vmatprep.subr.mxu0 0.0
    %149 = vmatpush1.msra.mxu0 %v115
    %150 = vmatprep.subr.mxu0 0.0
    %151 = vmatpush1.msra.mxu0 %v114
    %152 = vmatprep.subr.mxu0 0.0
    %153 = vmatpush1.msra.mxu0 %v113
    %154 = vmatprep.subr.mxu0 0.0
    %155 = vmatpush1.msra.mxu0 %v112
    %156 = vmatprep.subr.mxu0 0.0
    %157 = vmatpush1.msra.mxu0 %v111
    %158 = vmatprep.subr.mxu0 0.0
    %159 = vmatpush1.msra.mxu0 %v110
    %160 = vmatprep.subr.mxu0 0.0
    %161 = vmatpush1.msra.mxu0 %v109
    %162 = vmatprep.subr.mxu0 0.0
    %163 = vmatpush1.msra.mxu0 %v108
    %164 = vmatprep.subr.mxu0 0.0
    %165 = vmatpush1.msra.mxu0 %v107
    %166 = vmatprep.subr.mxu0 0.0
    %167 = vmatpush1.msra.mxu0 %v106
    %168 = vmatprep.subr.mxu0 0.0
    %169 = vmatpush2.msra.mxu0 0.0
    %170 = vmatprep.subr.mxu0 0.0
    %171 = vmatpush2.msra.mxu0 0.0
    %172 = vmatprep.subr.mxu0 0.0
    %173 = vmatpush2.msra.mxu0 0.0
    %174 = vmatprep.subr.mxu0 0.0
    %175 = vmatpush2.msra.mxu0 0.0
    %176 = vmatprep.subr.mxu0 0.0
    %177 = vmatpush2.msra.mxu0 0.0
    %178 = vmatprep.subr.mxu0 0.0
    %179 = vmatpush2.msra.mxu0 0.0
    %180 = vmatprep.subr.mxu0 0.0
    %181 = vmatpush2.msra.mxu0 0.0
    %182 = vmatprep.subr.mxu0 0.0
    %183 = vmatpush2.msra.mxu0 0.0
    %184 = vmatprep.subr.mxu0 0.0
    %185 = vmatpush2.msra.mxu0 0.0
    %186 = vmatprep.subr.mxu0 0.0
    %187 = vmatpush2.msra.mxu0 0.0
    %188 = vmatprep.subr.mxu0 0.0
    %189 = vmatpush2.msra.mxu0 0.0
    %190 = vmatprep.subr.mxu0 0.0
    %191 = vmatpush2.msra.mxu0 0.0
    %192 = vmatprep.subr.mxu0 0.0
    %193 = vmatpush2.msra.mxu0 %v125
    %194 = vmatprep.subr.mxu0 0.0
    %195 = vmatpush2.msra.mxu0 %v124
    %196 = vmatprep.subr.mxu0 0.0
    %197 = vmatpush2.msra.mxu0 %v123
    %198 = vmatprep.subr.mxu0 0.0
    %199 = vmatpush2.msra.mxu0 %v122
    %200 = vmatprep.mubr.f32.mxu0 %v134
    %201 = vmatmul.mubr.f32.gmra.mxu0 %v104
    %v202 = vpop.f32.mrf.mxu0
    %v203 = vadd.f32 %v131, %v202
    %v204 = vpop.f32.mrf.mxu0
    %205 = vdwg.mxu0
    %vm206 = vcmask 39936
    %207 = vst.msk [vmem:[#allocation2] sm:$0xff] %vm206, %v203
    // Predicated region
    $region22: #{tpu_custom_call.1} parent=1 // pred_check
      _
    $region23: #{tpu_custom_call.1} parent=1 // pred_check_branch
      %209 = sbr.rel (0) target = $region25
    $region24: #{tpu_custom_call.1} parent=1 // pred_region
      %s211 = ssub.s32 128, 128
      %212 = vsyncadd [#allocation3], %s211
      %s214 = sshll.u32 [#allocation2], 4
      %s215 = int_to_ptr.vmem [resolvable:$true] %s214
      %217 = dma.vmem_to_hbm [thread:$0]  %s215, 128, %s5, [#allocation3]
    $region25: #{tpu_custom_call.1} parent=1 // pred_fallthru
      _
    // Predicated region
    $region26: #{tpu_custom_call.1} parent=1 // pred_check
      _
    $region27: #{tpu_custom_call.1} parent=1 // pred_check_branch
      %219 = sbr.rel (0) target = $region29
    $region28: #{tpu_custom_call.1} parent=1 // pred_region
      %220 = dma.done [#allocation3], 128
    $region29: #{tpu_custom_call.1} parent=1 // pred_fallthru
      _
    %221 = vsyncpa [#allocation3], 1

</llo_original>
